<compile_context>
chip_gen: v7x
topology: tpu7x:2x2x1
jax: 0.10.0
libtpu: 0.0.40
codegen_flags: <defaults>
</compile_context>

<pallas_src>
import functools

import jax
import jax.numpy as jnp
from jax.experimental import pallas as pl
from jax.experimental.pallas import tpu as pltpu


def se_kernel(x_ref, w1_ref, b1_ref, w2_ref, b2_ref, o_ref, *, inv_hw):
    # AdaptiveAvgPool2d(1): fused load -> f32 -> lane-axis sum; divide by the
    # TRUE spatial size (padded lanes are zeros and do not affect the sum).
    # Do not keep a full f32 copy of the block live.
    pooled = jnp.sum(x_ref[...].astype(jnp.float32), axis=2) * inv_hw      # (Btile, Cp) f32

    # conv1 (1x1) == matmul over channels + bias, then relu (f32 accumulate).
    h = jnp.dot(pooled, w1_ref[...], preferred_element_type=jnp.float32) + b1_ref[...]
    h = jnp.maximum(h, 0.0)

    # conv2 (1x1) == matmul back to channels + bias.
    s = jnp.dot(h, w2_ref[...], preferred_element_type=jnp.float32) + b2_ref[...]

    # hard_sigmoid (PytorchOCR variant): relu6(1.2*x + 3) / 6
    s = jnp.clip(1.2 * s + 3.0, 0.0, 6.0) * (1.0 / 6.0)

    # Channel-wise scale. Re-read x_ref (VMEM->vreg, cheap) and multiply in the
    # storage dtype so the store side moves the minimum number of bytes.
    x = x_ref[...]
    o_ref[...] = x * s[:, :, None].astype(x.dtype)


def _round_up(v, m):
    return (v + m - 1) // m * m


def _device_params():
    """Generation-aware block / VMEM budget. Falls back to conservative defaults."""
    vmem_cap = 128 * 1024 * 1024
    try:
        vmem_cap = int(pltpu.get_tpu_info().vmem_capacity_bytes)
    except Exception:
        pass
    kind = ""
    try:
        kind = jax.devices()[0].device_kind.lower()
    except Exception:
        pass
    is_v7 = ("7" in kind) or (vmem_cap <= 64 * 1024 * 1024)
    if is_v7:
        # 64 MiB physical VMEM, 2 TCs/chip, 3.2 TB/s HBM.
        return dict(target_block_bytes=4 * 1024 * 1024,
                    vmem_limit_bytes=48 * 1024 * 1024,
                    min_grid_steps=4)
    # v5e / v6e: 128 MiB physical VMEM, 1 TC/chip. Raise the scoped limit
    # (defaults are only 16 / 32 MiB) and use big blocks.
    return dict(target_block_bytes=8 * 1024 * 1024,
                vmem_limit_bytes=96 * 1024 * 1024,
                min_grid_steps=1)


def _choose_btile(n, per_sample_bytes, target_bytes, min_steps):
    """Largest divisor of n whose block stays <= target_bytes; on multi-TC chips
    keep >= min_steps grid steps so each core gets pipelined work."""
    cap = max(1, target_bytes // max(per_sample_bytes, 1))
    if min_steps > 1 and n >= min_steps:
        cap = min(cap, n // min_steps)
    cap = max(1, min(cap, n))
    for b in range(cap, 0, -1):
        if n % b == 0:
            return b
    return 1


def se_module(x, w1_mat, b1_row, w2_mat, b2_row):
    # x: NCHW (same convention as the PyTorch module). Weights pre-reshaped to
    # matmul form: w1 (C, Cmid), b1 (1, Cmid), w2 (Cmid, C), b2 (1, C).
    N, C, H, W = x.shape
    HW = H * W
    Cmid = w1_mat.shape[1]

    params = _device_params()

    # Lane-dense layout: flatten spatial onto the lane axis and pad it to a
    # multiple of 128; pad C (sublane axis) to a multiple of 8. Zero padding;
    # the mean uses the true HW and the pad is sliced off afterwards.
    Cp = _round_up(C, 8)
    HWp = _round_up(HW, 128)

    x_flat = x.reshape(N, C, HW)
    if Cp != C or HWp != HW:
        x_flat = jnp.pad(x_flat, ((0, 0), (0, Cp - C), (0, HWp - HW)))

    w1p = jnp.pad(w1_mat.astype(jnp.float32), ((0, Cp - C), (0, 0)))
    b1p = b1_row.astype(jnp.float32)
    w2p = jnp.pad(w2_mat.astype(jnp.float32), ((0, 0), (0, Cp - C)))
    b2p = jnp.pad(b2_row.astype(jnp.float32), ((0, 0), (0, Cp - C)))

    per_sample_bytes = Cp * HWp * x.dtype.itemsize
    btile = _choose_btile(N, per_sample_bytes, params["target_block_bytes"],
                          params["min_grid_steps"])
    grid = (N // btile,)

    kernel = functools.partial(se_kernel, inv_hw=1.0 / float(HW))

    # Advisory cost estimate: the op is ~2 passes over x (read + write); the
    # squeeze matmuls are negligible.
    cost = pl.CostEstimate(
        flops=int(4 * N * C * Cmid + 2 * N * C * HW),
        transcendentals=0,
        bytes_accessed=int(2 * N * Cp * HWp * x.dtype.itemsize),
    )

    out_flat = pl.pallas_call(
        kernel,
        out_shape=jax.ShapeDtypeStruct((N, Cp, HWp), x.dtype),
        grid=grid,
        in_specs=[
            pl.BlockSpec((btile, Cp, HWp), lambda n: (n, 0, 0)),
            pl.BlockSpec((Cp, Cmid), lambda n: (0, 0)),
            pl.BlockSpec((1, Cmid), lambda n: (0, 0)),
            pl.BlockSpec((Cmid, Cp), lambda n: (0, 0)),
            pl.BlockSpec((1, Cp), lambda n: (0, 0)),
        ],
        out_specs=pl.BlockSpec((btile, Cp, HWp), lambda n: (n, 0, 0)),
        compiler_params=pltpu.CompilerParams(
            dimension_semantics=("parallel",),
            vmem_limit_bytes=params["vmem_limit_bytes"],
        ),
        cost_estimate=cost,
    )(x_flat, w1p, b1p, w2p, b2p)

    return out_flat[:, :C, :HW].reshape(N, C, H, W)


def se_reference(x, w1_mat, b1_row, w2_mat, b2_row):
    xf = x.astype(jnp.float32)
    pooled = jnp.mean(xf, axis=(2, 3))
    h = jnp.maximum(pooled @ w1_mat + b1_row, 0.0)
    s = h @ w2_mat + b2_row
    s = jnp.clip(1.2 * s + 3.0, 0.0, 6.0) / 6.0
    return xf * s[:, :, None, None]


def _make_params(key, C, reduction):
    Cmid = C // reduction
    k1, kb1, k2, kb2 = jax.random.split(key, 4)
    w1_t = jax.random.normal(k1, (Cmid, C, 1, 1), dtype=jnp.float32) * 0.5   # conv1 weight
    b1_t = jax.random.normal(kb1, (Cmid,), dtype=jnp.float32) * 0.1          # conv1 bias
    w2_t = jax.random.normal(k2, (C, Cmid, 1, 1), dtype=jnp.float32) * 0.5   # conv2 weight
    b2_t = jax.random.normal(kb2, (C,), dtype=jnp.float32) * 0.1             # conv2 bias
    w1_mat = w1_t.reshape(Cmid, C).T          # (C, Cmid)
    b1_row = b1_t.reshape(1, Cmid)            # (1, Cmid)
    w2_mat = w2_t.reshape(C, Cmid).T          # (Cmid, C)
    b2_row = b2_t.reshape(1, C)               # (1, C)
    return w1_mat, b1_row, w2_mat, b2_row


if __name__ == "__main__":
    key = jax.random.PRNGKey(0)
    kx, kp, kx2, kp2 = jax.random.split(key, 4)

    # --- aligned shapes (HW multiple of 128), f32 and bf16 storage ---
    N, C, H, W = 2, 8, 16, 16
    x = jax.random.normal(kx, (N, C, H, W), dtype=jnp.float32)
    w1_mat, b1_row, w2_mat, b2_row = _make_params(kp, C, reduction=4)

    out = jax.block_until_ready(se_module(x, w1_mat, b1_row, w2_mat, b2_row))
    ref = se_reference(x, w1_mat, b1_row, w2_mat, b2_row)
    assert out.shape == (N, C, H, W)
    assert jnp.allclose(out, ref, atol=1e-5, rtol=1e-5), "f32 mismatch vs reference"

    x_bf = x.astype(jnp.bfloat16)
    out_bf = jax.block_until_ready(se_module(x_bf, w1_mat, b1_row, w2_mat, b2_row))
    ref_bf = se_reference(x_bf, w1_mat, b1_row, w2_mat, b2_row)
    assert out_bf.dtype == jnp.bfloat16
    assert jnp.allclose(out_bf.astype(jnp.float32), ref_bf, atol=5e-2, rtol=5e-2), \
        "bf16 mismatch vs reference"

    # --- unaligned shapes (C=12 -> pad to 16, HW=100 -> pad to 128) ---
    N2, C2, H2, W2 = 2, 12, 10, 10
    x2 = jax.random.normal(kx2, (N2, C2, H2, W2), dtype=jnp.float32)
    w1_2, b1_2, w2_2, b2_2 = _make_params(kp2, C2, reduction=4)

    out2 = jax.block_until_ready(se_module(x2, w1_2, b1_2, w2_2, b2_2))
    ref2 = se_reference(x2, w1_2, b1_2, w2_2, b2_2)
    assert out2.shape == (N2, C2, H2, W2)
    assert jnp.allclose(out2, ref2, atol=1e-5, rtol=1e-5), "padded-shape mismatch vs reference"

    print("KERNEL_OK")
</pallas_src>

<mosaic_0001>
module attributes {stable_mosaic.version = 11 : i64} {
  func.func @se_kernel(%arg0: i32, %arg1: memref<2x8x256xf32, #tpu.memory_space<vmem>>, %arg2: memref<8x2xf32, #tpu.memory_space<vmem>>, %arg3: memref<1x2xf32, #tpu.memory_space<vmem>>, %arg4: memref<2x8xf32, #tpu.memory_space<vmem>>, %arg5: memref<1x8xf32, #tpu.memory_space<vmem>>, %arg6: memref<2x8x256xf32, #tpu.memory_space<vmem>>) attributes {dimension_semantics = [#tpu.dimension_semantics<parallel>], iteration_bounds = array<i64: 1>, scalar_prefetch = 0 : i64, scratch_operands = 0 : i64, tpu.core_type = #tpu.core_type<tc>, window_params = [{transform_indices = @transform_0, window_bounds = array<i64: 2, 8, 256>}, {pipeline_mode = #tpu.pipeline_mode<synchronous>, transform_indices = @transform_1, window_bounds = array<i64: 8, 2>}, {pipeline_mode = #tpu.pipeline_mode<synchronous>, transform_indices = @transform_2, window_bounds = array<i64: 1, 2>}, {pipeline_mode = #tpu.pipeline_mode<synchronous>, transform_indices = @transform_3, window_bounds = array<i64: 2, 8>}, {pipeline_mode = #tpu.pipeline_mode<synchronous>, transform_indices = @transform_4, window_bounds = array<i64: 1, 8>}, {transform_indices = @transform_5, window_bounds = array<i64: 2, 8, 256>}]} {
    %c0 = arith.constant 0 : index
    %c0_0 = arith.constant 0 : index
    %c0_1 = arith.constant 0 : index
    %0 = vector.load %arg1[%c0, %c0_0, %c0_1] : memref<2x8x256xf32, #tpu.memory_space<vmem>>, vector<2x8x256xf32>
    %cst = arith.constant dense<0.000000e+00> : vector<2x8xf32>
    %1 = vector.multi_reduction <add>, %0, %cst [2] : vector<2x8x256xf32> to vector<2x8xf32>
    %cst_2 = arith.constant 3.906250e-03 : f32
    %2 = vector.broadcast %cst_2 : f32 to vector<2x8xf32>
    %3 = arith.mulf %1, %2 : vector<2x8xf32>
    %c0_3 = arith.constant 0 : index
    %c0_4 = arith.constant 0 : index
    %4 = vector.load %arg2[%c0_3, %c0_4] : memref<8x2xf32, #tpu.memory_space<vmem>>, vector<8x2xf32>
    %cst_5 = arith.constant dense<0.000000e+00> : vector<2x2xf32>
    %5 = tpu.matmul %3, %4, %cst_5 {dimension_numbers = #tpu.dot_dimension_numbers<[1], [0], [0], [1], [0, 0, 1, 1], [], []>} : vector<2x8xf32>, vector<8x2xf32>, vector<2x2xf32> -> vector<2x2xf32>
    %c0_6 = arith.constant 0 : index
    %c0_7 = arith.constant 0 : index
    %6 = vector.load %arg3[%c0_6, %c0_7] : memref<1x2xf32, #tpu.memory_space<vmem>>, vector<1x2xf32>
    %7 = vector.broadcast %6 : vector<1x2xf32> to vector<2x2xf32>
    %8 = arith.addf %5, %7 : vector<2x2xf32>
    %cst_8 = arith.constant 0.000000e+00 : f32
    %9 = vector.broadcast %cst_8 : f32 to vector<2x2xf32>
    %10 = arith.maximumf %8, %9 : vector<2x2xf32>
    %c0_9 = arith.constant 0 : index
    %c0_10 = arith.constant 0 : index
    %11 = vector.load %arg4[%c0_9, %c0_10] : memref<2x8xf32, #tpu.memory_space<vmem>>, vector<2x8xf32>
    %cst_11 = arith.constant dense<0.000000e+00> : vector<2x8xf32>
    %12 = tpu.matmul %10, %11, %cst_11 {dimension_numbers = #tpu.dot_dimension_numbers<[1], [0], [0], [1], [0, 0, 1, 1], [], []>} : vector<2x2xf32>, vector<2x8xf32>, vector<2x8xf32> -> vector<2x8xf32>
    %c0_12 = arith.constant 0 : index
    %c0_13 = arith.constant 0 : index
    %13 = vector.load %arg5[%c0_12, %c0_13] : memref<1x8xf32, #tpu.memory_space<vmem>>, vector<1x8xf32>
    %14 = vector.broadcast %13 : vector<1x8xf32> to vector<2x8xf32>
    %15 = arith.addf %12, %14 : vector<2x8xf32>
    %cst_14 = arith.constant 1.200000e+00 : f32
    %16 = vector.broadcast %cst_14 : f32 to vector<2x8xf32>
    %17 = arith.mulf %16, %15 : vector<2x8xf32>
    %cst_15 = arith.constant 3.000000e+00 : f32
    %18 = vector.broadcast %cst_15 : f32 to vector<2x8xf32>
    %19 = arith.addf %17, %18 : vector<2x8xf32>
    %cst_16 = arith.constant 0.000000e+00 : f32
    %cst_17 = arith.constant 6.000000e+00 : f32
    %20 = vector.broadcast %cst_16 : f32 to vector<2x8xf32>
    %21 = arith.maximumf %20, %19 : vector<2x8xf32>
    %22 = vector.broadcast %cst_17 : f32 to vector<2x8xf32>
    %23 = arith.minimumf %22, %21 : vector<2x8xf32>
    %cst_18 = arith.constant 0.166666672 : f32
    %24 = vector.broadcast %cst_18 : f32 to vector<2x8xf32>
    %25 = arith.mulf %23, %24 : vector<2x8xf32>
    %c0_19 = arith.constant 0 : index
    %c0_20 = arith.constant 0 : index
    %c0_21 = arith.constant 0 : index
    %26 = vector.load %arg1[%c0_19, %c0_20, %c0_21] : memref<2x8x256xf32, #tpu.memory_space<vmem>>, vector<2x8x256xf32>
    %27 = vector.shape_cast %25 : vector<2x8xf32> to vector<2x8x1xf32>
    %28 = vector.broadcast %27 : vector<2x8x1xf32> to vector<2x8x256xf32>
    %29 = arith.mulf %26, %28 : vector<2x8x256xf32>
    %c0_22 = arith.constant 0 : index
    %c0_23 = arith.constant 0 : index
    %c0_24 = arith.constant 0 : index
    %30 = vector.load %arg6[%c0_22, %c0_23, %c0_24] : memref<2x8x256xf32, #tpu.memory_space<vmem>>, vector<2x8x256xf32>
    tpu.vector_store %arg6[%c0_22, %c0_23, %c0_24], %29 {strides = array<i32>} : memref<2x8x256xf32, #tpu.memory_space<vmem>>, vector<2x8x256xf32>,
    return
  }
  func.func @transform_0(%arg0: i32) -> (i32, i32, i32) {
    %c0_i32 = arith.constant 0 : i32
    %c0_i32_0 = arith.constant 0 : i32
    %c0_i32_1 = arith.constant 0 : i32
    return %arg0, %c0_i32, %c0_i32_0 : i32, i32, i32
  }
  func.func @transform_1(%arg0: i32) -> (i32, i32) {
    %c0_i32 = arith.constant 0 : i32
    %c0_i32_0 = arith.constant 0 : i32
    %c0_i32_1 = arith.constant 0 : i32
    return %c0_i32, %c0_i32_0 : i32, i32
  }
  func.func @transform_2(%arg0: i32) -> (i32, i32) {
    %c0_i32 = arith.constant 0 : i32
    %c0_i32_0 = arith.constant 0 : i32
    %c0_i32_1 = arith.constant 0 : i32
    return %c0_i32, %c0_i32_0 : i32, i32
  }
  func.func @transform_3(%arg0: i32) -> (i32, i32) {
    %c0_i32 = arith.constant 0 : i32
    %c0_i32_0 = arith.constant 0 : i32
    %c0_i32_1 = arith.constant 0 : i32
    return %c0_i32, %c0_i32_0 : i32, i32
  }
  func.func @transform_4(%arg0: i32) -> (i32, i32) {
    %c0_i32 = arith.constant 0 : i32
    %c0_i32_0 = arith.constant 0 : i32
    %c0_i32_1 = arith.constant 0 : i32
    return %c0_i32, %c0_i32_0 : i32, i32
  }
  func.func @transform_5(%arg0: i32) -> (i32, i32, i32) {
    %c0_i32 = arith.constant 0 : i32
    %c0_i32_0 = arith.constant 0 : i32
    %c0_i32_1 = arith.constant 0 : i32
    return %arg0, %c0_i32, %c0_i32_0 : i32, i32, i32
  }
}

</mosaic_0001>

<llo_original>
// kernel: tpu_custom_call.1
$region0: #{tpu_custom_call.1}
  #allocation0 [shape = 'u32[]', space=smem, size = 0x4, offset = 0x4, fixed_abs, tag = 'smem constant byte address 0x4 - core index']
  #allocation1 [shape = 'u32[144,128]{1,0:T(1,128)}', space=vmem, size = 0x12000, scoped, tag = 'internal scratch']
  %s0 = inlined_call_operand.hbm [shape: f32[2,8,256], index: 0, kind: input, shape index: {}]
  %s1 = inlined_call_operand.hbm [shape: f32[8,2], index: 1, kind: input, shape index: {}]
  %s2 = inlined_call_operand.hbm [shape: f32[1,2], index: 2, kind: input, shape index: {}]
  %s3 = inlined_call_operand.hbm [shape: f32[2,8], index: 3, kind: input, shape index: {}]
  %s4 = inlined_call_operand.hbm [shape: f32[1,8], index: 4, kind: input, shape index: {}]
  %s5 = inlined_call_operand.hbm [shape: f32[2,8,256], index: 5, kind: output, shape index: {}]
  %s6 = sld [smem:[#allocation0]]
  $region50: #{tpu_custom_call.1} parent=0
    _
  %s8 = ssub.s32 1, %s6
  %s9 = scalar_select 0, %s8, %s6
  $region1: #{tpu_custom_call.1} parent=0
    #allocation2 [shape = 'u8[16384]{0}', space=vmem, size = 0x4000, scoped, tag = 'input window, operand 0, single buffered']
    #allocation3 [shape = 's32[1]{0}', space=sflag, size = 0x4, scoped, tag = 'scoped memory for tpu_custom_call.1']
    #allocation4 [shape = 's32[1]{0}', space=sflag, size = 0x4, scoped, tag = 'scoped memory for tpu_custom_call.1']
    #allocation5 [shape = 'u8[4096]{0}', space=vmem, size = 0x1000, scoped, tag = 'input window, operand 1, single buffered']
    #allocation6 [shape = 's32[1]{0}', space=sflag, size = 0x4, scoped, tag = 'scoped memory for tpu_custom_call.1']
    #allocation7 [shape = 'u8[512]{0}', space=vmem, size = 0x400, scoped, tag = 'input window, operand 2, single buffered']
    #allocation8 [shape = 'u8[1024]{0}', space=vmem, size = 0x400, scoped, tag = 'input window, operand 3, single buffered']
    #allocation9 [shape = 's32[1]{0}', space=sflag, size = 0x4, scoped, tag = 'scoped memory for tpu_custom_call.1']
    #allocation10 [shape = 'u8[512]{0}', space=vmem, size = 0x400, scoped, tag = 'input window, operand 4, single buffered']
    #allocation11 [shape = 'u8[16384]{0}', space=vmem, size = 0x4000, scoped, tag = 'output window, operand 0, single buffered']
    %10 = vsyncpa [#allocation3], 0
    %11 = vsyncpa [#allocation6], 0
    %12 = vsyncpa [#allocation9], 0
    %13 = vsyncpa [#allocation4], 0
    // Predicated region
    $region2: #{tpu_custom_call.1} parent=1 // pred_check
      _
    $region3: #{tpu_custom_call.1} parent=1 // pred_check_branch
      %15 = sbr.rel (0) target = $region5
    $region4: #{tpu_custom_call.1} parent=1 // pred_region
      %s17 = ssub.s32 512, 512
      %18 = vsyncadd [#allocation3], %s17
      %s19 = sshll.u32 [#allocation2], 4
      %s20 = int_to_ptr.vmem [resolvable:$true] %s19
      %25 = dma.hbm_to_vmem [thread:$0]  %s0, 512, %s20, [#allocation3], 256, 256, 16
    $region5: #{tpu_custom_call.1} parent=1 // pred_fallthru
      _
    // Predicated region
    $region6: #{tpu_custom_call.1} parent=1 // pred_check
      _
    $region7: #{tpu_custom_call.1} parent=1 // pred_check_branch
      %27 = sbr.rel (0) target = $region9
    $region8: #{tpu_custom_call.1} parent=1 // pred_region
      %s29 = ssub.s32 128, 128
      %30 = vsyncadd [#allocation6], %s29
      %s32 = sshll.u32 [#allocation5], 4
      %s33 = int_to_ptr.vmem [resolvable:$true] %s32
      %35 = dma.hbm_to_vmem [thread:$0]  %s1, 128, %s33, [#allocation6]
    $region9: #{tpu_custom_call.1} parent=1 // pred_fallthru
      _
    // Predicated region
    $region10: #{tpu_custom_call.1} parent=1 // pred_check
      _
    $region11: #{tpu_custom_call.1} parent=1 // pred_check_branch
      %37 = sbr.rel (0) target = $region13
    $region12: #{tpu_custom_call.1} parent=1 // pred_region
      %s39 = ssub.s32 16, 16
      %40 = vsyncadd [#allocation6], %s39
      %s42 = sshll.u32 [#allocation7], 4
      %s43 = int_to_ptr.vmem [resolvable:$true] %s42
      %45 = dma.hbm_to_vmem [thread:$0]  %s2, 16, %s43, [#allocation6]
    $region13: #{tpu_custom_call.1} parent=1 // pred_fallthru
      _
    // Predicated region
    $region14: #{tpu_custom_call.1} parent=1 // pred_check
      _
    $region15: #{tpu_custom_call.1} parent=1 // pred_check_branch
      %47 = sbr.rel (0) target = $region17
    $region16: #{tpu_custom_call.1} parent=1 // pred_region
      %s49 = ssub.s32 32, 32
      %50 = vsyncadd [#allocation9], %s49
      %s52 = sshll.u32 [#allocation8], 4
      %s53 = int_to_ptr.vmem [resolvable:$true] %s52
      %55 = dma.hbm_to_vmem [thread:$0]  %s3, 32, %s53, [#allocation9]
    $region17: #{tpu_custom_call.1} parent=1 // pred_fallthru
      _
    // Predicated region
    $region18: #{tpu_custom_call.1} parent=1 // pred_check
      _
    $region19: #{tpu_custom_call.1} parent=1 // pred_check_branch
      %57 = sbr.rel (0) target = $region21
    $region20: #{tpu_custom_call.1} parent=1 // pred_region
      %s59 = ssub.s32 16, 16
      %60 = vsyncadd [#allocation9], %s59
      %s62 = sshll.u32 [#allocation10], 4
      %s63 = int_to_ptr.vmem [resolvable:$true] %s62
      %65 = dma.hbm_to_vmem [thread:$0]  %s4, 16, %s63, [#allocation9]
    $region21: #{tpu_custom_call.1} parent=1 // pred_fallthru
      _
    // Predicated region
    $region22: #{tpu_custom_call.1} parent=1 // pred_check
      _
    $region23: #{tpu_custom_call.1} parent=1 // pred_check_branch
      %67 = sbr.rel (0) target = $region25
    $region24: #{tpu_custom_call.1} parent=1 // pred_region
      %68 = dma.done [#allocation3], 512
    $region25: #{tpu_custom_call.1} parent=1 // pred_fallthru
      _
    // Predicated region
    $region26: #{tpu_custom_call.1} parent=1 // pred_check
      _
    $region27: #{tpu_custom_call.1} parent=1 // pred_check_branch
      %70 = sbr.rel (0) target = $region29
    $region28: #{tpu_custom_call.1} parent=1 // pred_region
      %71 = dma.done [#allocation6], 128
    $region29: #{tpu_custom_call.1} parent=1 // pred_fallthru
      _
    // Predicated region
    $region30: #{tpu_custom_call.1} parent=1 // pred_check
      _
    $region31: #{tpu_custom_call.1} parent=1 // pred_check_branch
      %73 = sbr.rel (0) target = $region33
    $region32: #{tpu_custom_call.1} parent=1 // pred_region
      %74 = dma.done [#allocation6], 16
    $region33: #{tpu_custom_call.1} parent=1 // pred_fallthru
      _
    // Predicated region
    $region34: #{tpu_custom_call.1} parent=1 // pred_check
      _
    $region35: #{tpu_custom_call.1} parent=1 // pred_check_branch
      %76 = sbr.rel (0) target = $region37
    $region36: #{tpu_custom_call.1} parent=1 // pred_region
      %77 = dma.done [#allocation9], 32
    $region37: #{tpu_custom_call.1} parent=1 // pred_fallthru
      _
    // Predicated region
    $region38: #{tpu_custom_call.1} parent=1 // pred_check
      _
    $region39: #{tpu_custom_call.1} parent=1 // pred_check_branch
      %79 = sbr.rel (0) target = $region41
    $region40: #{tpu_custom_call.1} parent=1 // pred_region
      %80 = dma.done [#allocation9], 16
    $region41: #{tpu_custom_call.1} parent=1 // pred_fallthru
      _
    %v81 = vld [vmem:[#allocation2] sm:$0xff]
    %v82 = vld [vmem:[#allocation2 + $0x8] sm:$0xff]
    %v83 = vld [vmem:[#allocation2 + $0x10] sm:$0xff]
    %v84 = vld [vmem:[#allocation2 + $0x18] sm:$0xff]
    %v85 = vadd.f32 %v81, %v82
    %86 = vadd.xlane.f32.xlu0 %v85
    %v87 = vpop.xlane.xlu0 %86
    %v88 = vadd.f32 %v83, %v84
    %89 = vadd.xlane.f32.xlu0 %v88
    %v90 = vpop.xlane.xlu0 %89
    %v91 = vmul.f32 %v87, 0.00390625
    %v92 = vmul.f32 %v90, 0.00390625
    %v93 = vld [vmem:[#allocation5] sm:$0xff]
    %v94 = vld [vmem:[#allocation7] sm:$0x1]
    %v96 = vlaneseq
    %v97 = vshrl.u32 %v96, 7
    %v98 = vsub.s32 0, %v97
    %v99 = vrot.slane %v94, %v98
    %v103 = vlaneseq
    %v104 = vand.u32 %v103, 127
    %v105 = vlaneseq
    %v106 = vshrl.u32 %v105, 7
    %v107 = vsub.s32 %v104, %v106
    %v108 = vrot.slane %v91, %v107
    %v109 = vlaneseq
    %v110 = vshrl.u32 %v109, 7
    %v111 = vsub.s32 %v104, %v110
    %v112 = vrot.slane %v92, %v111
    %vm113 = vcmask 1041409
    %v114 = vsel %vm113, %v112, %v108
    %vm115 = vcmask 64512
    %v116 = vsel %vm115, %v114, 0
    %118 = vmatprep.subr.mxu0 0.0
    %119 = vmatpush1.msra.mxu0 %v93
    %120 = vmatprep.subr.mxu0 0.0
    %121 = vmatpush1.msra.mxu0 0.0
    %122 = vmatprep.subr.mxu0 0.0
    %123 = vmatpush1.msra.mxu0 0.0
    %124 = vmatprep.subr.mxu0 0.0
    %125 = vmatpush1.msra.mxu0 0.0
    %126 = vmatprep.subr.mxu0 0.0
    %127 = vmatpush1.msra.mxu0 0.0
    %128 = vmatprep.subr.mxu0 0.0
    %129 = vmatpush1.msra.mxu0 0.0
    %130 = vmatprep.subr.mxu0 0.0
    %131 = vmatpush1.msra.mxu0 0.0
    %132 = vmatprep.subr.mxu0 0.0
    %133 = vmatpush1.msra.mxu0 0.0
    %134 = vmatprep.subr.mxu0 0.0
    %135 = vmatpush1.msra.mxu0 0.0
    %136 = vmatprep.subr.mxu0 0.0
    %137 = vmatpush1.msra.mxu0 0.0
    %138 = vmatprep.subr.mxu0 0.0
    %139 = vmatpush1.msra.mxu0 0.0
    %140 = vmatprep.subr.mxu0 0.0
    %141 = vmatpush1.msra.mxu0 0.0
    %142 = vmatprep.subr.mxu0 0.0
    %143 = vmatpush1.msra.mxu0 0.0
    %144 = vmatprep.subr.mxu0 0.0
    %145 = vmatpush1.msra.mxu0 0.0
    %146 = vmatprep.subr.mxu0 0.0
    %147 = vmatpush1.msra.mxu0 0.0
    %148 = vmatprep.subr.mxu0 0.0
    %149 = vmatpush1.msra.mxu0 0.0
    %150 = vmatprep.subr.mxu0 0.0
    %151 = vmatpush1.msra.mxu0 0.0
    %152 = vmatprep.subr.mxu0 0.0
    %153 = vmatpush1.msra.mxu0 0.0
    %154 = vmatprep.subr.mxu0 0.0
    %155 = vmatpush1.msra.mxu0 0.0
    %156 = vmatprep.subr.mxu0 0.0
    %157 = vmatpush1.msra.mxu0 0.0
    %158 = vmatprep.subr.mxu0 0.0
    %159 = vmatpush1.msra.mxu0 0.0
    %160 = vmatprep.subr.mxu0 0.0
    %161 = vmatpush1.msra.mxu0 0.0
    %162 = vmatprep.subr.mxu0 0.0
    %163 = vmatpush1.msra.mxu0 0.0
    %164 = vmatprep.subr.mxu0 0.0
    %165 = vmatpush1.msra.mxu0 0.0
    %166 = vmatprep.subr.mxu0 0.0
    %167 = vmatpush1.msra.mxu0 0.0
    %168 = vmatprep.subr.mxu0 0.0
    %169 = vmatpush1.msra.mxu0 0.0
    %170 = vmatprep.subr.mxu0 0.0
    %171 = vmatpush1.msra.mxu0 0.0
    %172 = vmatprep.subr.mxu0 0.0
    %173 = vmatpush1.msra.mxu0 0.0
    %174 = vmatprep.subr.mxu0 0.0
    %175 = vmatpush1.msra.mxu0 0.0
    %176 = vmatprep.subr.mxu0 0.0
    %177 = vmatpush1.msra.mxu0 0.0
    %178 = vmatprep.subr.mxu0 0.0
    %179 = vmatpush1.msra.mxu0 0.0
    %180 = vmatprep.subr.mxu0 0.0
    %181 = vmatpush1.msra.mxu0 0.0
    %182 = vmatprep.mubr.f32.mxu0 0.0
    %183 = vmatmul.mubr.f32.gmra.mrb[0].mxu0 %v116
    %v184 = vpop.f32.mrb[0].mxu0
    %v185 = vadd.f32 %v99, %v184
    %v186 = vpop.f32.mrb[0].mxu0
    %187 = vdwg.mxu0
    %v188 = vmax.f32 %v185, 0.0
    %v189 = vld [vmem:[#allocation8] sm:$0x3]
    %v190 = vld [vmem:[#allocation10] sm:$0x1]
    %v192 = vlaneseq
    %v193 = vshrl.u32 %v192, 7
    %v194 = vsub.s32 0, %v193
    %v195 = vrot.slane %v190, %v194
    %vm197 = vcmask 15360
    %v199 = vsel %vm197, %v188, 0
    %vm201 = vcmask 1041408
    %v203 = vsel %vm201, %v189, 0
    %205 = vmatprep.subr.mxu0 0.0
    %206 = vmatpush1.msra.mxu0 %v203
    %207 = vmatprep.subr.mxu0 0.0
    %208 = vmatpush1.msra.mxu0 0.0
    %209 = vmatprep.subr.mxu0 0.0
    %210 = vmatpush1.msra.mxu0 0.0
    %211 = vmatprep.subr.mxu0 0.0
    %212 = vmatpush1.msra.mxu0 0.0
    %213 = vmatprep.subr.mxu0 0.0
    %214 = vmatpush1.msra.mxu0 0.0
    %215 = vmatprep.subr.mxu0 0.0
    %216 = vmatpush1.msra.mxu0 0.0
    %217 = vmatprep.subr.mxu0 0.0
    %218 = vmatpush1.msra.mxu0 0.0
    %219 = vmatprep.subr.mxu0 0.0
    %220 = vmatpush1.msra.mxu0 0.0
    %221 = vmatprep.subr.mxu0 0.0
    %222 = vmatpush1.msra.mxu0 0.0
    %223 = vmatprep.subr.mxu0 0.0
    %224 = vmatpush1.msra.mxu0 0.0
    %225 = vmatprep.subr.mxu0 0.0
    %226 = vmatpush1.msra.mxu0 0.0
    %227 = vmatprep.subr.mxu0 0.0
    %228 = vmatpush1.msra.mxu0 0.0
    %229 = vmatprep.subr.mxu0 0.0
    %230 = vmatpush1.msra.mxu0 0.0
    %231 = vmatprep.subr.mxu0 0.0
    %232 = vmatpush1.msra.mxu0 0.0
    %233 = vmatprep.subr.mxu0 0.0
    %234 = vmatpush1.msra.mxu0 0.0
    %235 = vmatprep.subr.mxu0 0.0
    %236 = vmatpush1.msra.mxu0 0.0
    %237 = vmatprep.subr.mxu0 0.0
    %238 = vmatpush1.msra.mxu0 0.0
    %239 = vmatprep.subr.mxu0 0.0
    %240 = vmatpush1.msra.mxu0 0.0
    %241 = vmatprep.subr.mxu0 0.0
    %242 = vmatpush1.msra.mxu0 0.0
    %243 = vmatprep.subr.mxu0 0.0
    %244 = vmatpush1.msra.mxu0 0.0
    %245 = vmatprep.subr.mxu0 0.0
    %246 = vmatpush1.msra.mxu0 0.0
    %247 = vmatprep.subr.mxu0 0.0
    %248 = vmatpush1.msra.mxu0 0.0
    %249 = vmatprep.subr.mxu0 0.0
    %250 = vmatpush1.msra.mxu0 0.0
    %251 = vmatprep.subr.mxu0 0.0
    %252 = vmatpush1.msra.mxu0 0.0
    %253 = vmatprep.subr.mxu0 0.0
    %254 = vmatpush1.msra.mxu0 0.0
    %255 = vmatprep.subr.mxu0 0.0
    %256 = vmatpush1.msra.mxu0 0.0
    %257 = vmatprep.subr.mxu0 0.0
    %258 = vmatpush1.msra.mxu0 0.0
    %259 = vmatprep.subr.mxu0 0.0
    %260 = vmatpush1.msra.mxu0 0.0
    %261 = vmatprep.subr.mxu0 0.0
    %262 = vmatpush1.msra.mxu0 0.0
    %263 = vmatprep.subr.mxu0 0.0
    %264 = vmatpush1.msra.mxu0 0.0
    %265 = vmatprep.subr.mxu0 0.0
    %266 = vmatpush1.msra.mxu0 0.0
    %267 = vmatprep.subr.mxu0 0.0
    %268 = vmatpush1.msra.mxu0 0.0
    %269 = vmatprep.mubr.f32.mxu0 0.0
    %270 = vmatmul.mubr.f32.gmra.mrb[0].mxu0 %v199
    %v271 = vpop.f32.mrb[0].mxu0
    %v272 = vadd.f32 %v195, %v271
    %v273 = vpop.f32.mrb[0].mxu0
    %274 = vdwg.mxu0
    %v275 = vmul.f32 %v272, 1.2
    %v276 = vadd.f32 %v275, 3.0
    %v277 = vmax.f32 %v276, 0.0
    %v278 = vmin.f32 %v277, 6.0
    %v279 = vmul.f32 %v278, 0.16666667
    %v280 = vlaneseq
    %v281 = vshrl.u32 %v280, 7
    %v282 = vsub.s32 0, %v281
    %v283 = vrot.slane %v279, %v282
    %285 = vbcast.lane.b32.xlu0 %v283, 256
    %v286 = vpop.permute.xlu0 %285
    %v287 = vlaneseq
    %v288 = vshrl.u32 %v287, 7
    %v289 = vsub.s32 1, %v288
    %v290 = vrot.slane %v279, %v289
    %292 = vbcast.lane.b32.xlu0 %v290, 256
    %v293 = vpop.permute.xlu0 %292
    %v294 = vmul.f32 %v81, %v286
    %v295 = vmul.f32 %v82, %v286
    %v296 = vmul.f32 %v83, %v293
    %v297 = vmul.f32 %v84, %v293
    %298 = vst [vmem:[#allocation11] sm:$0xff] %v294
    %299 = vst [vmem:[#allocation11 + $0x8] sm:$0xff] %v295
    %300 = vst [vmem:[#allocation11 + $0x10] sm:$0xff] %v296
    %301 = vst [vmem:[#allocation11 + $0x18] sm:$0xff] %v297
    // Predicated region
    $region42: #{tpu_custom_call.1} parent=1 // pred_check
      _
    $region43: #{tpu_custom_call.1} parent=1 // pred_check_branch
      %303 = sbr.rel (0) target = $region45
    $region44: #{tpu_custom_call.1} parent=1 // pred_region
      %s305 = ssub.s32 512, 512
      %306 = vsyncadd [#allocation4], %s305
      %s307 = sshll.u32 [#allocation11], 4
      %s308 = int_to_ptr.vmem [resolvable:$true] %s307
      %313 = dma.vmem_to_hbm [thread:$0]  %s308, 512, %s5, [#allocation4], 256, 256, 16
    $region45: #{tpu_custom_call.1} parent=1 // pred_fallthru
      _
    // Predicated region
    $region46: #{tpu_custom_call.1} parent=1 // pred_check
      _
    $region47: #{tpu_custom_call.1} parent=1 // pred_check_branch
      %315 = sbr.rel (0) target = $region49
    $region48: #{tpu_custom_call.1} parent=1 // pred_region
      %316 = dma.done [#allocation4], 512
    $region49: #{tpu_custom_call.1} parent=1 // pred_fallthru
      _
    %317 = vsyncpa [#allocation3], 1
    %318 = vsyncpa [#allocation6], 1
    %319 = vsyncpa [#allocation9], 1
    %320 = vsyncpa [#allocation4], 1

</llo_original>
